<compile_context>
chip_gen: v5e
topology: v5e:2x2
jax: 0.10.0
libtpu: 0.0.40
codegen_flags: <defaults>
</compile_context>

<pallas_src>
import jax
import jax.numpy as jnp
from jax.experimental import pallas as pl
from jax.experimental.pallas import tpu as pltpu


def _proj_head_kernel(x_ref, w_ref, b_ref, o_ref):
    # Linear: y = x @ W + b  (MXU matmul, f32 accumulate)
    y = jnp.dot(x_ref[...], w_ref[...], preferred_element_type=jnp.float32)
    y = y + b_ref[...]                                 # (TN, Pp) + (1, Pp)

    # L2 normalize along feature axis (PyTorch dim=1).  Padded columns are
    # exactly zero, so they do not contribute to sq_sum.
    sq_sum = jnp.sum(y * y, axis=1, keepdims=True)     # (TN, 1)
    inv = jax.lax.rsqrt(jnp.maximum(sq_sum, 1e-24))    # == 1/max(||y||, 1e-12)
    o_ref[...] = (y * inv).astype(o_ref.dtype)


def _round_up(v, m):
    return ((v + m - 1) // m) * m


def _pick_tile_n(n_rows, dim_in, p_pad, x_bytes, w_bytes, o_bytes):
    """Largest row tile that fits a conservative double-buffered VMEM budget,
    capped so the grid keeps >=2 steps (v7x megacore) when n_rows allows."""
    budget = 12 * 1024 * 1024                           # safe on v5e/v6e/v7x
    fixed = 2 * dim_in * p_pad * w_bytes + 2 * p_pad * 4   # W + bias buffers
    per_row = 2 * (dim_in * x_bytes + p_pad * o_bytes)      # x tile + out tile
    avail = max(budget - fixed, per_row * 8)
    tile = max(8, min(int(avail // per_row), 2048))
    tile = (tile // 8) * 8
    # Keep at least 2 grid steps so both v7x TensorCores get work.
    half = max(_round_up(pl.cdiv(n_rows, 2), 8), 8)
    return min(tile, half)


def projection_head_forward(x, w, b, *, tile_n=None):
    """x: (N, dim_in), w: (dim_in, proj_dim), b: (proj_dim,) -> (N, proj_dim)."""
    N, dim_in = x.shape
    proj_dim = w.shape[1]

    # Lane-dense output: pad proj_dim up to a multiple of 128 with zero columns.
    p_pad = _round_up(proj_dim, 128)
    if p_pad != proj_dim:
        w_p = jnp.zeros((dim_in, p_pad), w.dtype).at[:, :proj_dim].set(w)
        b_p = jnp.zeros((p_pad,), b.dtype).at[:proj_dim].set(b)
    else:
        w_p, b_p = w, b
    b2 = b_p.reshape(1, p_pad)

    if tile_n is None:
        tile_n = _pick_tile_n(
            N, dim_in, p_pad,
            jnp.dtype(x.dtype).itemsize,
            jnp.dtype(w_p.dtype).itemsize,
            jnp.dtype(x.dtype).itemsize,
        )
    tile_n = max(8, (tile_n // 8) * 8)

    # Pad N to a multiple of tile_n (padded rows are discarded afterwards).
    n_pad = pl.cdiv(N, tile_n) * tile_n
    if n_pad != N:
        x_p = jnp.zeros((n_pad, dim_in), x.dtype).at[:N].set(x)
    else:
        x_p = x

    out = pl.pallas_call(
        _proj_head_kernel,
        out_shape=jax.ShapeDtypeStruct((n_pad, p_pad), x.dtype),
        grid_spec=pltpu.PrefetchScalarGridSpec(
            num_scalar_prefetch=0,
            grid=(n_pad // tile_n,),
            in_specs=[
                pl.BlockSpec((tile_n, dim_in), lambda i: (i, 0)),   # x row-tile
                pl.BlockSpec((dim_in, p_pad), lambda i: (0, 0)),    # full W (padded)
                pl.BlockSpec((1, p_pad), lambda i: (0, 0)),         # bias (padded)
            ],
            out_specs=pl.BlockSpec((tile_n, p_pad), lambda i: (i, 0)),
        ),
        compiler_params=pltpu.CompilerParams(
            dimension_semantics=("parallel",),
            vmem_limit_bytes=32 * 1024 * 1024,
        ),
    )(x_p, w_p, b2)

    return out[:N, :proj_dim]


if __name__ == "__main__":
    # Small, module-consistent shapes: N points of dim_in features -> proj_dim=64
    N, dim_in, proj_dim = 128, 32, 64

    key = jax.random.PRNGKey(0)
    kx, kw, kb = jax.random.split(key, 3)

    # Deterministic synthetic parameters (PyTorch nn.Linear shapes:
    # W (proj_dim, dim_in), b (proj_dim,))
    bound = 1.0 / (dim_in ** 0.5)
    w_torch_layout = jax.random.uniform(kw, (proj_dim, dim_in), jnp.float32, -bound, bound)
    b = jax.random.uniform(kb, (proj_dim,), jnp.float32, -bound, bound)
    w = w_torch_layout.T                     # (dim_in, proj_dim) for y = x @ W + b

    x = jax.random.normal(kx, (N, dim_in), jnp.float32)
    # NOTE: for bandwidth-bound production use, x/w can be fed as bfloat16
    # (matmul still accumulates in f32 and the normalize math stays f32).

    out = projection_head_forward(x, w, b)
    out = jax.block_until_ready(out)

    # Pure-JAX reference check
    y_ref = x @ w + b
    ref = y_ref / jnp.maximum(jnp.linalg.norm(y_ref, axis=1, keepdims=True), 1e-12)
    assert out.shape == (N, proj_dim)
    assert jnp.allclose(out, ref, atol=1e-5, rtol=1e-5)

    print("KERNEL_OK")
</pallas_src>

<mosaic_0001>
module attributes {stable_mosaic.version = 11 : i64} {
  func.func @_proj_head_kernel(%arg0: i32, %arg1: memref<64x32xf32, #tpu.memory_space<vmem>>, %arg2: memref<32x128xf32, #tpu.memory_space<vmem>>, %arg3: memref<1x128xf32, #tpu.memory_space<vmem>>, %arg4: memref<64x128xf32, #tpu.memory_space<vmem>>) attributes {dimension_semantics = [#tpu.dimension_semantics<parallel>], iteration_bounds = array<i64: 2>, scalar_prefetch = 0 : i64, scratch_operands = 0 : i64, tpu.core_type = #tpu.core_type<tc>, window_params = [{transform_indices = @transform_0, window_bounds = array<i64: 64, 32>}, {pipeline_mode = #tpu.pipeline_mode<synchronous>, transform_indices = @transform_1, window_bounds = array<i64: 32, 128>}, {pipeline_mode = #tpu.pipeline_mode<synchronous>, transform_indices = @transform_2, window_bounds = array<i64: 1, 128>}, {transform_indices = @transform_3, window_bounds = array<i64: 64, 128>}]} {
    %c0 = arith.constant 0 : index
    %c0_0 = arith.constant 0 : index
    %0 = vector.load %arg1[%c0, %c0_0] : memref<64x32xf32, #tpu.memory_space<vmem>>, vector<64x32xf32>
    %c0_1 = arith.constant 0 : index
    %c0_2 = arith.constant 0 : index
    %1 = vector.load %arg2[%c0_1, %c0_2] : memref<32x128xf32, #tpu.memory_space<vmem>>, vector<32x128xf32>
    %cst = arith.constant dense<0.000000e+00> : vector<64x128xf32>
    %2 = tpu.matmul %0, %1, %cst {dimension_numbers = #tpu.dot_dimension_numbers<[1], [0], [0], [1], [0, 0, 1, 1], [], []>} : vector<64x32xf32>, vector<32x128xf32>, vector<64x128xf32> -> vector<64x128xf32>
    %c0_3 = arith.constant 0 : index
    %c0_4 = arith.constant 0 : index
    %3 = vector.load %arg3[%c0_3, %c0_4] : memref<1x128xf32, #tpu.memory_space<vmem>>, vector<1x128xf32>
    %4 = vector.broadcast %3 : vector<1x128xf32> to vector<64x128xf32>
    %5 = arith.addf %2, %4 : vector<64x128xf32>
    %6 = arith.mulf %5, %5 : vector<64x128xf32>
    %cst_5 = arith.constant dense<0.000000e+00> : vector<64xf32>
    %7 = vector.multi_reduction <add>, %6, %cst_5 [1] : vector<64x128xf32> to vector<64xf32>
    %8 = vector.shape_cast %7 : vector<64xf32> to vector<64x1xf32>
    %cst_6 = arith.constant 1.000000e-24 : f32
    %9 = vector.broadcast %cst_6 : f32 to vector<64x1xf32>
    %10 = arith.maximumf %8, %9 : vector<64x1xf32>
    %11 = math.rsqrt %10 : vector<64x1xf32>
    %12 = vector.broadcast %11 : vector<64x1xf32> to vector<64x128xf32>
    %13 = arith.mulf %5, %12 : vector<64x128xf32>
    %c0_7 = arith.constant 0 : index
    %c0_8 = arith.constant 0 : index
    %14 = vector.load %arg4[%c0_7, %c0_8] : memref<64x128xf32, #tpu.memory_space<vmem>>, vector<64x128xf32>
    tpu.vector_store %arg4[%c0_7, %c0_8], %13 {strides = array<i32>} : memref<64x128xf32, #tpu.memory_space<vmem>>, vector<64x128xf32>,
    return
  }
  func.func @transform_0(%arg0: i32) -> (i32, i32) {
    %c0_i32 = arith.constant 0 : i32
    %c0_i32_0 = arith.constant 0 : i32
    return %arg0, %c0_i32 : i32, i32
  }
  func.func @transform_1(%arg0: i32) -> (i32, i32) {
    %c0_i32 = arith.constant 0 : i32
    %c0_i32_0 = arith.constant 0 : i32
    %c0_i32_1 = arith.constant 0 : i32
    return %c0_i32, %c0_i32_0 : i32, i32
  }
  func.func @transform_2(%arg0: i32) -> (i32, i32) {
    %c0_i32 = arith.constant 0 : i32
    %c0_i32_0 = arith.constant 0 : i32
    %c0_i32_1 = arith.constant 0 : i32
    return %c0_i32, %c0_i32_0 : i32, i32
  }
  func.func @transform_3(%arg0: i32) -> (i32, i32) {
    %c0_i32 = arith.constant 0 : i32
    %c0_i32_0 = arith.constant 0 : i32
    return %arg0, %c0_i32 : i32, i32
  }
}

</mosaic_0001>

<llo_original>
// kernel: tpu_custom_call.1
$region0: #{tpu_custom_call.1}
  #allocation0 [shape = 'u32[]', space=smem, size = 0x4, offset = 0x4, fixed_abs, tag = 'smem constant byte address 0x4 - core index']
  #allocation1 [shape = 'u32[72,128]{1,0:T(1,128)}', space=vmem, size = 0x9000, scoped, tag = 'internal scratch']
  %s0 = inlined_call_operand.vmem [shape: f32[128,32], index: 0, kind: input, shape index: {}]
  %s1 = inlined_call_operand.vmem [shape: f32[32,128], index: 1, kind: input, shape index: {}]
  %s2 = inlined_call_operand.vmem [shape: f32[1,128], index: 2, kind: input, shape index: {}]
  %s3 = inlined_call_operand.hbm [shape: f32[128,128], index: 3, kind: output, shape index: {}]
  %s4 = sld [smem:[#allocation0]]
  $region45: #{tpu_custom_call.1} parent=0
    _
  %s6 = ssub.s32 1, %s4
  %s7 = scalar_select 0, %s6, %s4
  $region1: #{tpu_custom_call.1} parent=0
    #allocation2 [shape = 'u8[65536]{0}', space=vmem, size = 0x10000, scoped, tag = 'output window, operand 0']
    #allocation3 [shape = 's32[2]{0}', space=sflag, size = 0x8, scoped, tag = 'scoped memory for tpu_custom_call.1']
    %8 = vsyncpa [#allocation3], 0
    %s9 = scalar_lea.sflag [#allocation3], 1
    %10 = vsyncpa %s9, 0
    loop: start=0, step=1, limit=4
    $region2: #{tpu_custom_call.1} parent=1 // loop_pre_header
      _
    $region3: #{tpu_custom_call.1} parent=1 // loop_header
      %s12 = sphi 0, %s16
      %p13 = scmp.ge.s32.totalorder %s12, 4
      %s22 = sphi 0, %s24
      %s25 = sphi 0, %s22
      %s26 = sphi 0, %s25
      %s42 = sphi 0, %s26
      %s46 = sphi 0, %s46
      %s48 = sphi 0, %s46
      %s49 = sphi 0, %s48
      %s63 = sphi 0, %s49
      %s67 = sphi 0, %s67
      %s69 = sphi 0, %s67
      %s70 = sphi 0, %s69
      %s84 = sphi 0, %s70
      %s90 = sphi 0, %s92
      %s93 = sphi 0, %s90
      %s94 = sphi 0, %s93
      %s110 = sphi 0, %s94
    $region4: #{tpu_custom_call.1} parent=1 // loop_header_branch
      %15 = sbr.rel (%p13) target = $region8
    $region5: #{tpu_custom_call.1} parent=1 // loop_body
      %s17 = ssub.s32 %s12, 1
      %s18 = ssub.s32 %s12, 2
      %s19 = sadd.s32 %s12, 1
      %s20 = ssub.s32 %s12, %s19
      %p21 = scmp.eq.s32.totalorder %s20, 0
      %s23 = sadd.s32 %s22, 1
      %s24 = scalar_select %p21, %s22, %s23
      %p27 = pneg %p21
      %p28 = scmp.eq.s32.totalorder %s12, 1
      %p29 = por %p27, %p28
      %p30 = scmp.ne.s32.totalorder %s22, %s25
      %p31 = scmp.eq.s32.totalorder %s12, 0
      %p32 = por %p30, %p31
      %p33 = scmp.ne.s32.totalorder %s22, %s25
      %p34 = scmp.eq.s32.totalorder %s17, 1
      %p35 = por %p33, %p34
      %p36 = scmp.ne.s32.totalorder %s25, %s26
      %p37 = scmp.eq.s32.totalorder %s17, 0
      %p38 = por %p36, %p37
      %p39 = scmp.ne.s32.totalorder %s25, %s26
      %p40 = scmp.eq.s32.totalorder %s18, 1
      %p41 = por %p39, %p40
      %p43 = scmp.ne.s32.totalorder %s26, %s42
      %p44 = scmp.eq.s32.totalorder %s18, 0
      %p45 = por %p43, %p44
      %s47 = sadd.s32 %s46, 1
      %p50 = scmp.eq.s32.totalorder %s12, 1
      %p51 = scmp.ne.s32.totalorder %s46, %s48
      %p52 = scmp.eq.s32.totalorder %s12, 0
      %p53 = por %p51, %p52
      %p54 = scmp.ne.s32.totalorder %s46, %s48
      %p55 = scmp.eq.s32.totalorder %s17, 1
      %p56 = por %p54, %p55
      %p57 = scmp.ne.s32.totalorder %s48, %s49
      %p58 = scmp.eq.s32.totalorder %s17, 0
      %p59 = por %p57, %p58
      %p60 = scmp.ne.s32.totalorder %s48, %s49
      %p61 = scmp.eq.s32.totalorder %s18, 1
      %p62 = por %p60, %p61
      %p64 = scmp.ne.s32.totalorder %s49, %s63
      %p65 = scmp.eq.s32.totalorder %s18, 0
      %p66 = por %p64, %p65
      %s68 = sadd.s32 %s67, 1
      %p71 = scmp.eq.s32.totalorder %s12, 1
      %p72 = scmp.ne.s32.totalorder %s67, %s69
      %p73 = scmp.eq.s32.totalorder %s12, 0
      %p74 = por %p72, %p73
      %p75 = scmp.ne.s32.totalorder %s67, %s69
      %p76 = scmp.eq.s32.totalorder %s17, 1
      %p77 = por %p75, %p76
      %p78 = scmp.ne.s32.totalorder %s69, %s70
      %p79 = scmp.eq.s32.totalorder %s17, 0
      %p80 = por %p78, %p79
      %p81 = scmp.ne.s32.totalorder %s69, %s70
      %p82 = scmp.eq.s32.totalorder %s18, 1
      %p83 = por %p81, %p82
      %p85 = scmp.ne.s32.totalorder %s70, %s84
      %p86 = scmp.eq.s32.totalorder %s18, 0
      %p87 = por %p85, %p86
      %s88 = ssub.s32 %s12, %s19
      %p89 = scmp.eq.s32.totalorder %s88, 0
      %s91 = sadd.s32 %s90, 1
      %s92 = scalar_select %p89, %s90, %s91
      %p95 = pneg %p89
      %p96 = scmp.eq.s32.totalorder %s12, 1
      %p97 = por %p95, %p96
      %p98 = scmp.ne.s32.totalorder %s90, %s93
      %p99 = scmp.eq.s32.totalorder %s12, 0
      %p100 = por %p98, %p99
      %p101 = scmp.ne.s32.totalorder %s90, %s93
      %p102 = scmp.eq.s32.totalorder %s17, 1
      %p103 = por %p101, %p102
      %p104 = scmp.ne.s32.totalorder %s93, %s94
      %p105 = scmp.eq.s32.totalorder %s17, 0
      %p106 = por %p104, %p105
      %p107 = scmp.ne.s32.totalorder %s93, %s94
      %p108 = scmp.eq.s32.totalorder %s18, 1
      %p109 = por %p107, %p108
      %p111 = scmp.ne.s32.totalorder %s94, %s110
      %p112 = scmp.eq.s32.totalorder %s18, 0
      %p113 = por %p111, %p112
      %p114 = scmp.le.s32.totalorder 1, %s12
      %p115 = scmp.lt.s32.totalorder %s12, 3
      %p116 = pnand %p114, %p115
      %p117 = pneg %p116
      // Predicated region
      $region9: #{tpu_custom_call.1} parent=5 // pred_check
        _
      $region10: #{tpu_custom_call.1} parent=5 // pred_check_branch
        %119 = sbr.rel (%p116) target = $region12
      $region11: #{tpu_custom_call.1} parent=5 // pred_region
        %s120 = ssub.s32 %s12, 1
        // Predicated region
        $region13: #{tpu_custom_call.1} parent=11 // pred_check
          %p121 = pneg %p59
        $region14: #{tpu_custom_call.1} parent=11 // pred_check_branch
          %123 = sbr.rel (%p121) target = $region16
        $region15: #{tpu_custom_call.1} parent=11 // pred_region
          _
        $region16: #{tpu_custom_call.1} parent=11 // pred_fallthru
          _
        // Predicated region
        $region17: #{tpu_custom_call.1} parent=11 // pred_check
          %p124 = pneg %p80
        $region18: #{tpu_custom_call.1} parent=11 // pred_check_branch
          %126 = sbr.rel (%p124) target = $region20
        $region19: #{tpu_custom_call.1} parent=11 // pred_region
          _
        $region20: #{tpu_custom_call.1} parent=11 // pred_fallthru
          _
      $region12: #{tpu_custom_call.1} parent=5 // pred_fallthru
        _
      %p127 = scmp.lt.s32.totalorder %s12, 2
      // Predicated region
      $region21: #{tpu_custom_call.1} parent=5 // pred_check
        %p128 = pneg %p127
      $region22: #{tpu_custom_call.1} parent=5 // pred_check_branch
        %130 = sbr.rel (%p128) target = $region24
      $region23: #{tpu_custom_call.1} parent=5 // pred_region
        // Predicated region
        $region25: #{tpu_custom_call.1} parent=23 // pred_check
          %p131 = pneg %p32
        $region26: #{tpu_custom_call.1} parent=23 // pred_check_branch
          %133 = sbr.rel (%p131) target = $region28
        $region27: #{tpu_custom_call.1} parent=23 // pred_region
          %s134 = smul.u32 8, %s12
          %p135 = scmp.lt.s32.totalorder %s134, 15
          %s136 = scalar_select %p135, %s134, 15
          %s137 = smul.addr %s136, 8
          %s138 = scalar_lea.vmem %s0, %s137
          %s139 = smul.u32 8, %s12
        $region28: #{tpu_custom_call.1} parent=23 // pred_fallthru
          _
      $region24: #{tpu_custom_call.1} parent=5 // pred_fallthru
        _
      %p140 = scmp.le.s32.totalorder 1, %s12
      %p141 = scmp.lt.s32.totalorder %s12, 3
      %p142 = pnand %p140, %p141
      %p143 = pneg %p142
      // Predicated region
      $region29: #{tpu_custom_call.1} parent=5 // pred_check
        _
      $region30: #{tpu_custom_call.1} parent=5 // pred_check_branch
        %145 = sbr.rel (%p142) target = $region32
      $region31: #{tpu_custom_call.1} parent=5 // pred_region
        %s146 = ssub.s32 %s12, 1
        %s147 = smul.u32 8, %s17
        %p148 = scmp.lt.s32.totalorder %s147, 15
        %s149 = scalar_select %p148, %s147, 15
        %s150 = smul.addr %s149, 8
        %s151 = scalar_lea.vmem %s0, %s150
        %p152 = pneg %p38
        %p153 = pneg %p35
        %p154 = pneg %p59
        %p155 = pneg %p56
        %p156 = pneg %p80
        %p157 = pneg %p77
        %p158 = pneg %p106
        %p159 = pneg %p103
        %s160 = sand.u32 %s93, 1
        %s161 = scalar_lea.sflag [#allocation3], %s160
        %s162 = sand.u32 %s93, 1
        %s163 = smul.addr %s162, 64
        %s164 = scalar_lea.vmem [#allocation2], %s163
        %s165 = smul.u32 8, %s17
        %p166 = scmp.lt.s32.totalorder %s165, 15
        %s167 = scalar_select %p166, %s165, 15
        %s168 = smul.addr %s167, 8
        %s169 = scalar_lea.vmem %s0, %s168
        %s170 = smul.u32 8, %s17
        %s171 = smul.u32 8, %s17
        %v172 = vld [vmem:[%s169] sm:$0xff]
        %v173 = vld [vmem:[%s169 + $0x8] sm:$0xff]
        %v174 = vld [vmem:[%s169 + $0x10] sm:$0xff]
        %v175 = vld [vmem:[%s169 + $0x18] sm:$0xff]
        %v176 = vld [vmem:[%s169 + $0x20] sm:$0xff]
        %v177 = vld [vmem:[%s169 + $0x28] sm:$0xff]
        %v178 = vld [vmem:[%s169 + $0x30] sm:$0xff]
        %v179 = vld [vmem:[%s169 + $0x38] sm:$0xff]
        %v180 = vld [vmem:[%s1] sm:$0xff]
        %v181 = vld [vmem:[%s1 + $0x8] sm:$0xff]
        %v182 = vld [vmem:[%s1 + $0x10] sm:$0xff]
        %v183 = vld [vmem:[%s1 + $0x18] sm:$0xff]
        %v184 = vld [vmem:[%s2] sm:$0x1]
        %v186 = vperm.slane %v184, 0
        %vm188 = vcmask 261120
        %v190 = vsel %vm188, %v172, 0
        %v193 = vsel %vm188, %v173, 0
        %v196 = vsel %vm188, %v174, 0
        %v199 = vsel %vm188, %v175, 0
        %v202 = vsel %vm188, %v176, 0
        %v205 = vsel %vm188, %v177, 0
        %v208 = vsel %vm188, %v178, 0
        %v211 = vsel %vm188, %v179, 0
        %213 = vmatpush.msra.mxu0 0.0
        %214 = vmatpush.msra.mxu0 0.0
        %215 = vmatpush.msra.mxu0 0.0
        %216 = vmatpush.msra.mxu0 0.0
        %217 = vmatpush.msra.mxu0 0.0
        %218 = vmatpush.msra.mxu0 0.0
        %219 = vmatpush.msra.mxu0 0.0
        %220 = vmatpush.msra.mxu0 0.0
        %221 = vmatpush.msra.mxu0 0.0
        %222 = vmatpush.msra.mxu0 0.0
        %223 = vmatpush.msra.mxu0 0.0
        %224 = vmatpush.msra.mxu0 0.0
        %225 = vmatpush.msra.mxu0 %v183
        %226 = vmatpush.msra.mxu0 %v182
        %227 = vmatpush.msra.mxu0 %v181
        %228 = vmatpush.msra.mxu0 %v180
        %229 = vmatmul.f32.gmra.mxu0 %v190
        %v230 = vpop.f32.mrf.mxu0
        %v231 = vadd.f32 %v186, %v230
        %232 = vmatmul.f32.gmra.mxu0 %v193
        %v233 = vpop.f32.mrf.mxu0
        %v234 = vadd.f32 %v186, %v233
        %235 = vmatmul.f32.gmra.mxu0 %v196
        %v236 = vpop.f32.mrf.mxu0
        %v237 = vadd.f32 %v186, %v236
        %238 = vmatmul.f32.gmra.mxu0 %v199
        %v239 = vpop.f32.mrf.mxu0
        %v240 = vadd.f32 %v186, %v239
        %241 = vmatmul.f32.gmra.mxu0 %v202
        %v242 = vpop.f32.mrf.mxu0
        %v243 = vadd.f32 %v186, %v242
        %244 = vmatmul.f32.gmra.mxu0 %v205
        %v245 = vpop.f32.mrf.mxu0
        %v246 = vadd.f32 %v186, %v245
        %247 = vmatmul.f32.gmra.mxu0 %v208
        %v248 = vpop.f32.mrf.mxu0
        %v249 = vadd.f32 %v186, %v248
        %250 = vmatmul.f32.gmra.mxu0 %v211
        %v251 = vpop.f32.mrf.mxu0
        %v252 = vadd.f32 %v186, %v251
        %253 = vdwg.mxu0
        %v254 = vmul.f32 %v231, %v231
        %v255 = vmul.f32 %v234, %v234
        %v256 = vmul.f32 %v237, %v237
        %v257 = vmul.f32 %v240, %v240
        %v258 = vmul.f32 %v243, %v243
        %v259 = vmul.f32 %v246, %v246
        %v260 = vmul.f32 %v249, %v249
        %v261 = vmul.f32 %v252, %v252
        %262 = vadd.xlane.f32.xlu0 %v254
        %v263 = vpop.xlane.xlu0 %262
        %264 = vadd.xlane.f32.xlu0 %v255
        %v265 = vpop.xlane.xlu0 %264
        %266 = vadd.xlane.f32.xlu0 %v256
        %v267 = vpop.xlane.xlu0 %266
        %268 = vadd.xlane.f32.xlu0 %v257
        %v269 = vpop.xlane.xlu0 %268
        %270 = vadd.xlane.f32.xlu0 %v258
        %v271 = vpop.xlane.xlu0 %270
        %272 = vadd.xlane.f32.xlu0 %v259
        %v273 = vpop.xlane.xlu0 %272
        %274 = vadd.xlane.f32.xlu0 %v260
        %v275 = vpop.xlane.xlu0 %274
        %276 = vadd.xlane.f32.xlu0 %v261
        %v277 = vpop.xlane.xlu0 %276
        %v278 = vmax.f32 %v263, 1e-24
        %v279 = vmax.f32 %v265, 1e-24
        %v280 = vmax.f32 %v267, 1e-24
        %v281 = vmax.f32 %v269, 1e-24
        %v282 = vmax.f32 %v271, 1e-24
        %v283 = vmax.f32 %v273, 1e-24
        %v284 = vmax.f32 %v275, 1e-24
        %v285 = vmax.f32 %v277, 1e-24
        %v286 = vrsqrt.pop %v278
        %v287 = vmul.f32 %v286, %v278
        %v288 = vmul.f32 %v287, %v286
        %v289 = vmul.f32 0.5, %v288
        %v290 = vsub.f32 1.5, %v289
        %v291 = vmul.f32 %v286, %v290
        %vm292 = vweird.f32 %v278
        %vm293 = vweird.f32 %v286
        %vm294 = vmor %vm292, %vm293
        %v295 = vsel %vm294, %v286, %v291
        %v296 = vrsqrt.pop %v279
        %v297 = vmul.f32 %v296, %v279
        %v298 = vmul.f32 %v297, %v296
        %v299 = vmul.f32 0.5, %v298
        %v300 = vsub.f32 1.5, %v299
        %v301 = vmul.f32 %v296, %v300
        %vm302 = vweird.f32 %v279
        %vm303 = vweird.f32 %v296
        %vm304 = vmor %vm302, %vm303
        %v305 = vsel %vm304, %v296, %v301
        %v306 = vrsqrt.pop %v280
        %v307 = vmul.f32 %v306, %v280
        %v308 = vmul.f32 %v307, %v306
        %v309 = vmul.f32 0.5, %v308
        %v310 = vsub.f32 1.5, %v309
        %v311 = vmul.f32 %v306, %v310
        %vm312 = vweird.f32 %v280
        %vm313 = vweird.f32 %v306
        %vm314 = vmor %vm312, %vm313
        %v315 = vsel %vm314, %v306, %v311
        %v316 = vrsqrt.pop %v281
        %v317 = vmul.f32 %v316, %v281
        %v318 = vmul.f32 %v317, %v316
        %v319 = vmul.f32 0.5, %v318
        %v320 = vsub.f32 1.5, %v319
        %v321 = vmul.f32 %v316, %v320
        %vm322 = vweird.f32 %v281
        %vm323 = vweird.f32 %v316
        %vm324 = vmor %vm322, %vm323
        %v325 = vsel %vm324, %v316, %v321
        %v326 = vrsqrt.pop %v282
        %v327 = vmul.f32 %v326, %v282
        %v328 = vmul.f32 %v327, %v326
        %v329 = vmul.f32 0.5, %v328
        %v330 = vsub.f32 1.5, %v329
        %v331 = vmul.f32 %v326, %v330
        %vm332 = vweird.f32 %v282
        %vm333 = vweird.f32 %v326
        %vm334 = vmor %vm332, %vm333
        %v335 = vsel %vm334, %v326, %v331
        %v336 = vrsqrt.pop %v283
        %v337 = vmul.f32 %v336, %v283
        %v338 = vmul.f32 %v337, %v336
        %v339 = vmul.f32 0.5, %v338
        %v340 = vsub.f32 1.5, %v339
        %v341 = vmul.f32 %v336, %v340
        %vm342 = vweird.f32 %v283
        %vm343 = vweird.f32 %v336
        %vm344 = vmor %vm342, %vm343
        %v345 = vsel %vm344, %v336, %v341
        %v346 = vrsqrt.pop %v284
        %v347 = vmul.f32 %v346, %v284
        %v348 = vmul.f32 %v347, %v346
        %v349 = vmul.f32 0.5, %v348
        %v350 = vsub.f32 1.5, %v349
        %v351 = vmul.f32 %v346, %v350
        %vm352 = vweird.f32 %v284
        %vm353 = vweird.f32 %v346
        %vm354 = vmor %vm352, %vm353
        %v355 = vsel %vm354, %v346, %v351
        %v356 = vrsqrt.pop %v285
        %v357 = vmul.f32 %v356, %v285
        %v358 = vmul.f32 %v357, %v356
        %v359 = vmul.f32 0.5, %v358
        %v360 = vsub.f32 1.5, %v359
        %v361 = vmul.f32 %v356, %v360
        %vm362 = vweird.f32 %v285
        %vm363 = vweird.f32 %v356
        %vm364 = vmor %vm362, %vm363
        %v365 = vsel %vm364, %v356, %v361
        %v366 = vmul.f32 %v231, %v295
        %v367 = vmul.f32 %v234, %v305
        %v368 = vmul.f32 %v237, %v315
        %v369 = vmul.f32 %v240, %v325
        %v370 = vmul.f32 %v243, %v335
        %v371 = vmul.f32 %v246, %v345
        %v372 = vmul.f32 %v249, %v355
        %v373 = vmul.f32 %v252, %v365
        %374 = vst [vmem:[%s164] sm:$0xff] %v366
        %375 = vst [vmem:[%s164 + $0x8] sm:$0xff] %v367
        %376 = vst [vmem:[%s164 + $0x10] sm:$0xff] %v368
        %377 = vst [vmem:[%s164 + $0x18] sm:$0xff] %v369
        %378 = vst [vmem:[%s164 + $0x20] sm:$0xff] %v370
        %379 = vst [vmem:[%s164 + $0x28] sm:$0xff] %v371
        %380 = vst [vmem:[%s164 + $0x30] sm:$0xff] %v372
        %381 = vst [vmem:[%s164 + $0x38] sm:$0xff] %v373
        %s382 = sand.u32 %s93, 1
        %s383 = scalar_lea.sflag [#allocation3], %s382
        %s384 = sand.u32 %s93, 1
        %s385 = smul.addr %s384, 64
        %s386 = scalar_lea.vmem [#allocation2], %s385
        // Predicated region
        $region33: #{tpu_custom_call.1} parent=31 // pred_check
          %p387 = pneg %p103
        $region34: #{tpu_custom_call.1} parent=31 // pred_check_branch
          %389 = sbr.rel (%p387) target = $region36
        $region35: #{tpu_custom_call.1} parent=31 // pred_region
          %s390 = smul.u32 8, %s17
          %392 = vsyncadd %s383, 0
          %s393 = smul.addr %s390, 8
          %s394 = scalar_lea.hbm %s3, %s393
          %s395 = sshll.u32 %s386, 4
          %s396 = int_to_ptr.vmem [resolvable:$true] %s395
          %s397 = sshll.u32 %s394, 4
          %s398 = int_to_ptr.hbm [resolvable:$true] %s397
          %403 = dma.vmem_to_hbm [thread:$0]  %s396, 1024, %s398, %s383, 128, 128, 8
        $region36: #{tpu_custom_call.1} parent=31 // pred_fallthru
          _
      $region32: #{tpu_custom_call.1} parent=5 // pred_fallthru
        _
      %p404 = scmp.le.s32.totalorder 2, %s12
      // Predicated region
      $region37: #{tpu_custom_call.1} parent=5 // pred_check
        %p405 = pneg %p404
      $region38: #{tpu_custom_call.1} parent=5 // pred_check_branch
        %407 = sbr.rel (%p405) target = $region40
      $region39: #{tpu_custom_call.1} parent=5 // pred_region
        %s408 = ssub.s32 %s12, 2
        // Predicated region
        $region41: #{tpu_custom_call.1} parent=39 // pred_check
          %p409 = pneg %p109
        $region42: #{tpu_custom_call.1} parent=39 // pred_check_branch
          %411 = sbr.rel (%p409) target = $region44
        $region43: #{tpu_custom_call.1} parent=39 // pred_region
          %s412 = sand.u32 %s94, 1
          %s413 = scalar_lea.sflag [#allocation3], %s412
          %s414 = sand.u32 %s94, 1
          %s415 = smul.addr %s414, 64
          %s416 = scalar_lea.vmem [#allocation2], %s415
          %418 = dma.done %s413, 1024
        $region44: #{tpu_custom_call.1} parent=39 // pred_fallthru
          _
      $region40: #{tpu_custom_call.1} parent=5 // pred_fallthru
        _
    $region6: #{tpu_custom_call.1} parent=1 // loop_footer
      %s16 = sadd.s32 1, %s12
    $region7: #{tpu_custom_call.1} parent=1 // loop_footer_branch
      %11 = sbr.rel target = $region3
    $region8: #{tpu_custom_call.1} parent=1 // loop_exit
      _
    %419 = vsyncpa [#allocation3], 1
    %s420 = scalar_lea.sflag [#allocation3], 1
    %421 = vsyncpa %s420, 1

</llo_original>
